<compile_context>
chip_gen: v7x
topology: tpu7x:2x2x1
jax: 0.10.0
libtpu: 0.0.40
codegen_flags: <defaults>
</compile_context>

<pallas_src>
import jax
import jax.numpy as jnp
from jax.experimental import pallas as pl
from jax.experimental.pallas import tpu as pltpu


# ----------------------------------------------------------------------------
# Kernel: single lane-dense VPU add (mem-bound).
# ----------------------------------------------------------------------------
def _pos_embed_kernel(x_ref, pe_ref, o_ref):
    # x_ref: (b_tile, lane_tile); pe_ref: (1, lane_tile) -> broadcast over rows.
    o_ref[...] = (x_ref[...] + pe_ref[...]).astype(o_ref.dtype)


# ----------------------------------------------------------------------------
# Positional-encoding table (matches the PyTorch double loop, vectorized).
# ----------------------------------------------------------------------------
def make_positional_encoding(seq_len: int, d_model: int, dtype=jnp.float32):
    pos = jnp.arange(seq_len, dtype=jnp.float32)[:, None]        # (S, 1)
    i = jnp.arange(d_model, dtype=jnp.float32)[None, :]          # (1, D)
    is_even = (jnp.arange(d_model)[None, :] % 2) == 0            # (1, D)
    exponent = jnp.where(is_even, i, i - 1.0) / float(d_model)   # i/d or (i-1)/d
    angle = pos / jnp.power(10000.0, exponent)                   # (S, D)
    pe = jnp.where(is_even, jnp.sin(angle), jnp.cos(angle))
    return pe.astype(dtype)


# ----------------------------------------------------------------------------
# Tile selection: largest lane tile (multiple of 128, or full extent) and
# batch tile (multiple of 8, or full extent) that fit the pipeline budget.
# ----------------------------------------------------------------------------
_PIPELINE_BUDGET_BYTES = 24 * 1024 * 1024   # safe on v7x (64 MiB VMEM) too
_VMEM_LIMIT_BYTES = 48 * 1024 * 1024        # > default 16/32 MiB scoped limits


def _divisors_desc(n: int):
    ds = set()
    i = 1
    while i * i <= n:
        if n % i == 0:
            ds.add(i)
            ds.add(n // i)
        i += 1
    return sorted(ds, reverse=True)


def _choose_tiles(B: int, L: int, itemsize: int):
    lane_cands = [d for d in _divisors_desc(L) if d % 128 == 0]
    if not lane_cands:
        lane_cands = [L]                       # full-extent block is always legal
    b_cands = [d for d in _divisors_desc(B) if d == B or d % 8 == 0]
    if not b_cands:
        b_cands = [B]
    fallback = (b_cands[-1], lane_cands[-1])
    for b_tile in b_cands:                     # prefer full batch (max pe reuse)
        for lane_tile in lane_cands:           # then largest lane tile that fits
            # double-buffered x + out blocks, plus the (resident) pe block
            live_bytes = 2 * (2 * b_tile * lane_tile + lane_tile) * itemsize
            if live_bytes <= _PIPELINE_BUDGET_BYTES:
                return b_tile, lane_tile
    return fallback


# ----------------------------------------------------------------------------
# Wrapper
# ----------------------------------------------------------------------------
def positional_embedding(x, pe):
    """x: (B, S, d_model); pe: (S, d_model). Returns x + pe (dropout = identity)."""
    B, S, D = x.shape
    assert pe.shape == (S, D), (pe.shape, (S, D))

    dtype = x.dtype
    pe = pe.astype(dtype)                      # match activation dtype (halves pe bytes for bf16)

    # Lane-dense flattening: the feature axis merges into one long lane axis,
    # so the last block dim is a big multiple of 128 regardless of d_model.
    L = S * D
    x2 = x.reshape(B, L)
    pe2 = pe.reshape(1, L)

    itemsize = jnp.dtype(dtype).itemsize
    b_tile, lane_tile = _choose_tiles(B, L, itemsize)
    n_lane = L // lane_tile
    n_b = B // b_tile

    out = pl.pallas_call(
        _pos_embed_kernel,
        out_shape=jax.ShapeDtypeStruct((B, L), dtype),
        grid_spec=pltpu.PrefetchScalarGridSpec(
            num_scalar_prefetch=0,
            # lane-tile axis OUTER, batch axis INNER: pe's block index is
            # constant across the inner batch loop -> pe tile stays resident.
            grid=(n_lane, n_b),
            in_specs=[
                pl.BlockSpec((b_tile, lane_tile), lambda l, b: (b, l)),   # x
                pl.BlockSpec((1, lane_tile), lambda l, b: (0, l)),        # pe (shared over B)
            ],
            out_specs=pl.BlockSpec((b_tile, lane_tile), lambda l, b: (b, l)),
        ),
        compiler_params=pltpu.CompilerParams(
            # Shard the outer (lane-tile) axis across cores; keep the batch
            # loop sequential per core so the pe-residency win is preserved.
            dimension_semantics=("parallel", "arbitrary"),
            vmem_limit_bytes=_VMEM_LIMIT_BYTES,
        ),
    )(x2, pe2)

    return out.reshape(B, S, D)


def _reference(x, pe):
    return x + pe[None, :, :].astype(x.dtype)


if __name__ == "__main__":
    # Small deterministic example consistent with the module:
    # batch=2, seq_len=8, d_model=32 (dropout p irrelevant in eval mode).
    B, S, d_model = 2, 8, 32

    key = jax.random.PRNGKey(0)
    x = jax.random.normal(key, (B, S, d_model), dtype=jnp.float32)

    pe = make_positional_encoding(S, d_model)

    out = positional_embedding(x, pe)
    out = jax.block_until_ready(out)

    ref = _reference(x, pe)
    assert out.shape == (B, S, d_model), out.shape
    assert jnp.allclose(out, ref, atol=1e-6, rtol=1e-6), "mismatch vs reference"

    print("KERNEL_OK")
</pallas_src>

<mosaic_0001>
module attributes {stable_mosaic.version = 11 : i64} {
  func.func @_pos_embed_kernel(%arg0: i32, %arg1: i32, %arg2: memref<2x256xf32, #tpu.memory_space<vmem>>, %arg3: memref<1x256xf32, #tpu.memory_space<vmem>>, %arg4: memref<2x256xf32, #tpu.memory_space<vmem>>) attributes {dimension_semantics = [#tpu.dimension_semantics<parallel>, #tpu.dimension_semantics<arbitrary>], iteration_bounds = array<i64: 1, 1>, scalar_prefetch = 0 : i64, scratch_operands = 0 : i64, tpu.core_type = #tpu.core_type<tc>, window_params = [{transform_indices = @transform_0, window_bounds = array<i64: 2, 256>}, {transform_indices = @transform_1, window_bounds = array<i64: 1, 256>}, {transform_indices = @transform_2, window_bounds = array<i64: 2, 256>}]} {
    %c0 = arith.constant 0 : index
    %c0_0 = arith.constant 0 : index
    %0 = vector.load %arg2[%c0, %c0_0] : memref<2x256xf32, #tpu.memory_space<vmem>>, vector<2x256xf32>
    %c0_1 = arith.constant 0 : index
    %c0_2 = arith.constant 0 : index
    %1 = vector.load %arg3[%c0_1, %c0_2] : memref<1x256xf32, #tpu.memory_space<vmem>>, vector<1x256xf32>
    %2 = vector.broadcast %1 : vector<1x256xf32> to vector<2x256xf32>
    %3 = arith.addf %0, %2 : vector<2x256xf32>
    %c0_3 = arith.constant 0 : index
    %c0_4 = arith.constant 0 : index
    %4 = vector.load %arg4[%c0_3, %c0_4] : memref<2x256xf32, #tpu.memory_space<vmem>>, vector<2x256xf32>
    tpu.vector_store %arg4[%c0_3, %c0_4], %3 {strides = array<i32>} : memref<2x256xf32, #tpu.memory_space<vmem>>, vector<2x256xf32>,
    return
  }
  func.func @transform_0(%arg0: i32, %arg1: i32) -> (i32, i32) {
    %c0_i32 = arith.constant 0 : i32
    return %arg1, %arg0 : i32, i32
  }
  func.func @transform_1(%arg0: i32, %arg1: i32) -> (i32, i32) {
    %c0_i32 = arith.constant 0 : i32
    %c0_i32_0 = arith.constant 0 : i32
    return %c0_i32, %arg0 : i32, i32
  }
  func.func @transform_2(%arg0: i32, %arg1: i32) -> (i32, i32) {
    %c0_i32 = arith.constant 0 : i32
    return %arg1, %arg0 : i32, i32
  }
}

</mosaic_0001>

<llo_original>
// kernel: tpu_custom_call.1
$region0: #{tpu_custom_call.1}
  #allocation0 [shape = 'u32[]', space=smem, size = 0x4, offset = 0x4, fixed_abs, tag = 'smem constant byte address 0x4 - core index']
  #allocation1 [shape = 'u32[144,128]{1,0:T(1,128)}', space=vmem, size = 0x12000, scoped, tag = 'internal scratch']
  %s0 = inlined_call_operand.hbm [shape: f32[2,256], index: 0, kind: input, shape index: {}]
  %s1 = inlined_call_operand.vmem [shape: f32[1,256], index: 1, kind: input, shape index: {}]
  %s2 = inlined_call_operand.hbm [shape: f32[2,256], index: 2, kind: output, shape index: {}]
  %s3 = sld [smem:[#allocation0]]
  $region22: #{tpu_custom_call.1} parent=0
    _
  %s5 = ssub.s32 1, %s3
  %s6 = scalar_select 0, %s5, %s3
  $region1: #{tpu_custom_call.1} parent=0
    #allocation2 [shape = 'u8[2048]{0}', space=vmem, size = 0x800, scoped, tag = 'input window, operand 0, single buffered']
    #allocation3 [shape = 's32[1]{0}', space=sflag, size = 0x4, scoped, tag = 'scoped memory for tpu_custom_call.1']
    #allocation4 [shape = 's32[1]{0}', space=sflag, size = 0x4, scoped, tag = 'scoped memory for tpu_custom_call.1']
    #allocation5 [shape = 'u8[2048]{0}', space=vmem, size = 0x800, scoped, tag = 'output window, operand 0, single buffered']
    %7 = vsyncpa [#allocation3], 0
    %8 = vsyncpa [#allocation4], 0
    // Predicated region
    $region2: #{tpu_custom_call.1} parent=1 // pred_check
      _
    $region3: #{tpu_custom_call.1} parent=1 // pred_check_branch
      %10 = sbr.rel (0) target = $region5
    $region4: #{tpu_custom_call.1} parent=1 // pred_region
      %s12 = ssub.s32 64, 64
      %13 = vsyncadd [#allocation3], %s12
      %s15 = sshll.u32 [#allocation2], 4
      %s16 = int_to_ptr.vmem [resolvable:$true] %s15
      %18 = dma.hbm_to_vmem [thread:$0]  %s0, 64, %s16, [#allocation3]
    $region5: #{tpu_custom_call.1} parent=1 // pred_fallthru
      _
    // Predicated region
    $region6: #{tpu_custom_call.1} parent=1 // pred_check
      _
    $region7: #{tpu_custom_call.1} parent=1 // pred_check_branch
      %20 = sbr.rel (0) target = $region9
    $region8: #{tpu_custom_call.1} parent=1 // pred_region
      _
    $region9: #{tpu_custom_call.1} parent=1 // pred_fallthru
      _
    // Predicated region
    $region10: #{tpu_custom_call.1} parent=1 // pred_check
      _
    $region11: #{tpu_custom_call.1} parent=1 // pred_check_branch
      %22 = sbr.rel (0) target = $region13
    $region12: #{tpu_custom_call.1} parent=1 // pred_region
      %23 = dma.done [#allocation3], 64
    $region13: #{tpu_custom_call.1} parent=1 // pred_fallthru
      _
    %v24 = vld [vmem:[#allocation2] sm:$0xf]
    %v25 = vld [vmem:[%s1] sm:$0x3]
    %v27 = vlaneseq
    %v28 = vshrl.u32 %v27, 7
    %v29 = vsub.s32 0, %v28
    %v30 = vrot.slane %v25, %v29
    %v31 = vlaneseq
    %v32 = vshrl.u32 %v31, 7
    %v33 = vsub.s32 1, %v32
    %v34 = vrot.slane %v25, %v33
    %v35 = vcombine.low %v30, %v34
    %v37 = vunpack.c.l.s4 1983009808
    %v38 = vunpack.c.0.s8 %v37
    %v39 = vlaneseq
    %v40 = vshrl.u32 %v39, 7
    %v41 = vsub.s32 %v38, %v40
    %v42 = vrot.slane %v35, %v41
    %v44 = vadd.f32 %v24, %v42
    %45 = vst [vmem:[#allocation5] sm:$0xf] %v44
    // Predicated region
    $region14: #{tpu_custom_call.1} parent=1 // pred_check
      _
    $region15: #{tpu_custom_call.1} parent=1 // pred_check_branch
      %47 = sbr.rel (0) target = $region17
    $region16: #{tpu_custom_call.1} parent=1 // pred_region
      %s49 = ssub.s32 64, 64
      %50 = vsyncadd [#allocation4], %s49
      %s52 = sshll.u32 [#allocation5], 4
      %s53 = int_to_ptr.vmem [resolvable:$true] %s52
      %55 = dma.vmem_to_hbm [thread:$0]  %s53, 64, %s2, [#allocation4]
    $region17: #{tpu_custom_call.1} parent=1 // pred_fallthru
      _
    // Predicated region
    $region18: #{tpu_custom_call.1} parent=1 // pred_check
      _
    $region19: #{tpu_custom_call.1} parent=1 // pred_check_branch
      %57 = sbr.rel (0) target = $region21
    $region20: #{tpu_custom_call.1} parent=1 // pred_region
      %58 = dma.done [#allocation4], 64
    $region21: #{tpu_custom_call.1} parent=1 // pred_fallthru
      _
    %59 = vsyncpa [#allocation3], 1
    %60 = vsyncpa [#allocation4], 1

</llo_original>
